<compile_context>
chip_gen: v6e
topology: v6e:2x2x1
jax: 0.10.0
libtpu: 0.0.40
codegen_flags: <defaults>
</compile_context>

<pallas_src>
import math
from functools import partial

import jax
import jax.numpy as jnp
from jax.experimental import pallas as pl
from jax.experimental.pallas import tpu as pltpu


def _make_mcp_kernel(threshold, trace_decay):
    """Build the elementwise McCulloch-Pitts kernel with baked-in constants."""
    threshold = float(threshold)
    trace_decay = float(trace_decay)

    def kernel(x_ref, traces_ref, s_ref, traces_out_ref):
        x = x_ref[...]
        # compute_potential: v = x  (identity; handled in the wrapper, no output)
        # compute_spike: s = v >= threshold
        spike = x >= threshold
        s_ref[...] = spike.astype(jnp.uint8)
        # refractory_and_reset: no-op for McCulloch-Pitts
        # NeuralPopulation.forward (additive_spike_trace=False):
        #   traces *= trace_decay; traces.masked_fill_(s, 1)
        traces_out_ref[...] = jnp.where(spike, 1.0, traces_ref[...] * trace_decay)

    return kernel


def _pick_block_rows(R, C):
    """Choose a row-block size: multiple of 32 (native u8 tiling), ~MiB-sized
    f32 blocks, and >= 2 grid steps when the population is large enough so the
    parallel grid axis can be sharded across v7x's two TensorCores."""
    assert R % 32 == 0 and C % 128 == 0
    budget_rows = max(32, (2 << 20) // (4 * C))     # ~2 MiB of f32 per block
    target = min(R, budget_rows)
    if R >= 64 and target > R // 2:
        target = R // 2                             # guarantee >= 2 grid steps
    block_rows = max(32, (target // 32) * 32)
    while R % block_rows != 0:                      # R % 32 == 0 guarantees exit
        block_rows -= 32
    return block_rows


@partial(jax.jit, static_argnums=(2, 3, 4), donate_argnums=(1,))
def mcculloch_pitts_forward(x, traces, threshold, trace_decay, block_rows=None):
    """Run one McCulloch-Pitts simulation step.

    x, traces : float32 arrays of shape (R, C) with R % 32 == 0 and C % 128 == 0
                (the flat population of n = R*C neurons viewed lane-dense).
    Returns (v, s, traces_new) with dtypes (float32, uint8, float32); v is x.
    `traces` is donated and aliased to the `traces_new` output (in-place state
    update, matching the PyTorch module's buffer semantics).
    """
    R, C = x.shape
    assert traces.shape == (R, C)
    if block_rows is None:
        block_rows = _pick_block_rows(R, C)
    assert R % block_rows == 0 and block_rows % 32 == 0

    kernel = _make_mcp_kernel(threshold, trace_decay)
    spec = pl.BlockSpec((block_rows, C), lambda i: (i, 0))

    s, traces_new = pl.pallas_call(
        kernel,
        out_shape=(
            jax.ShapeDtypeStruct((R, C), jnp.uint8),    # s (spike tensor)
            jax.ShapeDtypeStruct((R, C), jnp.float32),  # updated traces
        ),
        grid=(R // block_rows,),
        in_specs=[spec, spec],       # x, traces
        out_specs=(spec, spec),      # s, traces_new
        # traces is a state buffer updated in place in the PyTorch module;
        # alias it to the traces output (buffer reuse, together with donation).
        input_output_aliases={1: 1},
        compiler_params=pltpu.CompilerParams(
            dimension_semantics=("parallel",)
        ),
    )(x, traces)

    # compute_potential is the identity: v aliases the input, no kernel output.
    v = x
    return v, s, traces_new


if __name__ == "__main__":
    # Population of n = 64 * 256 = 16384 neurons, viewed lane-dense as (64, 256).
    rows, cols = 64, 256

    # Module parameters (deterministic, per McCullochPitts.__init__ defaults).
    threshold = 1.0
    tau_s = 10.0
    dt = 0.1
    trace_decay = math.exp(-dt / tau_s)

    key = jax.random.PRNGKey(0)
    kx, kt = jax.random.split(key)
    # Input potential around the threshold so some neurons spike.
    x = jax.random.normal(kx, (rows, cols), dtype=jnp.float32) + 0.8
    # Previous spike traces (state buffer).
    traces = jax.random.uniform(kt, (rows, cols), dtype=jnp.float32)

    # Reference in plain JAX (computed BEFORE the call: `traces` is donated).
    s_ref = x >= threshold
    tr_ref = jnp.where(s_ref, 1.0, traces * trace_decay)

    v, s, traces_new = mcculloch_pitts_forward(x, traces, threshold, trace_decay)
    jax.block_until_ready((v, s, traces_new))

    v_ok = jnp.allclose(v, x)
    s_ok = jnp.array_equal(s.astype(bool), s_ref)
    tr_ok = jnp.allclose(traces_new, tr_ref, rtol=1e-6, atol=1e-6)
    assert bool(v_ok) and bool(s_ok) and bool(tr_ok), "mismatch vs reference"
    assert bool(jnp.any(s)) and not bool(jnp.all(s)), "degenerate spike pattern"

    print("KERNEL_OK")
</pallas_src>

<mosaic_0001>
module attributes {stable_mosaic.version = 11 : i64} {
  func.func @kernel(%arg0: i32, %arg1: memref<32x256xf32, #tpu.memory_space<vmem>>, %arg2: memref<32x256xf32, #tpu.memory_space<vmem>>, %arg3: memref<32x256xi8, #tpu.memory_space<vmem>>, %arg4: memref<32x256xf32, #tpu.memory_space<vmem>>) attributes {dimension_semantics = [#tpu.dimension_semantics<parallel>], iteration_bounds = array<i64: 2>, scalar_prefetch = 0 : i64, scratch_operands = 0 : i64, tpu.core_type = #tpu.core_type<tc>, window_params = [{transform_indices = @transform_0, window_bounds = array<i64: 32, 256>}, {transform_indices = @transform_1, window_bounds = array<i64: 32, 256>}, {transform_indices = @transform_2, window_bounds = array<i64: 32, 256>}, {transform_indices = @transform_3, window_bounds = array<i64: 32, 256>}]} {
    %c0 = arith.constant 0 : index
    %c0_0 = arith.constant 0 : index
    %0 = vector.load %arg1[%c0, %c0_0] : memref<32x256xf32, #tpu.memory_space<vmem>>, vector<32x256xf32>
    %cst = arith.constant 1.000000e+00 : f32
    %1 = vector.broadcast %cst : f32 to vector<32x256xf32>
    %2 = arith.cmpf oge, %0, %1 : vector<32x256xf32>
    %3 = arith.extui %2 : vector<32x256xi1> to vector<32x256xi8>
    %c0_1 = arith.constant 0 : index
    %c0_2 = arith.constant 0 : index
    %4 = vector.load %arg3[%c0_1, %c0_2] : memref<32x256xi8, #tpu.memory_space<vmem>>, vector<32x256xi8>
    tpu.vector_store %arg3[%c0_1, %c0_2], %3 {strides = array<i32>} : memref<32x256xi8, #tpu.memory_space<vmem>>, vector<32x256xi8>,
    %c0_3 = arith.constant 0 : index
    %c0_4 = arith.constant 0 : index
    %5 = vector.load %arg2[%c0_3, %c0_4] : memref<32x256xf32, #tpu.memory_space<vmem>>, vector<32x256xf32>
    %cst_5 = arith.constant 0.990049839 : f32
    %6 = vector.broadcast %cst_5 : f32 to vector<32x256xf32>
    %7 = arith.mulf %5, %6 : vector<32x256xf32>
    %cst_6 = arith.constant 1.000000e+00 : f32
    %8 = vector.broadcast %cst_6 : f32 to vector<32x256xf32>
    %9 = arith.select %2, %8, %7 : vector<32x256xi1>, vector<32x256xf32>
    %c0_7 = arith.constant 0 : index
    %c0_8 = arith.constant 0 : index
    %10 = vector.load %arg4[%c0_7, %c0_8] : memref<32x256xf32, #tpu.memory_space<vmem>>, vector<32x256xf32>
    tpu.vector_store %arg4[%c0_7, %c0_8], %9 {strides = array<i32>} : memref<32x256xf32, #tpu.memory_space<vmem>>, vector<32x256xf32>,
    return
  }
  func.func @transform_0(%arg0: i32) -> (i32, i32) {
    %c0_i32 = arith.constant 0 : i32
    %c0_i32_0 = arith.constant 0 : i32
    return %arg0, %c0_i32 : i32, i32
  }
  func.func @transform_1(%arg0: i32) -> (i32, i32) {
    %c0_i32 = arith.constant 0 : i32
    %c0_i32_0 = arith.constant 0 : i32
    return %arg0, %c0_i32 : i32, i32
  }
  func.func @transform_2(%arg0: i32) -> (i32, i32) {
    %c0_i32 = arith.constant 0 : i32
    %c0_i32_0 = arith.constant 0 : i32
    return %arg0, %c0_i32 : i32, i32
  }
  func.func @transform_3(%arg0: i32) -> (i32, i32) {
    %c0_i32 = arith.constant 0 : i32
    %c0_i32_0 = arith.constant 0 : i32
    return %arg0, %c0_i32 : i32, i32
  }
}

</mosaic_0001>

<llo_original>
// kernel: mcculloch_pitts_forward.1
$region0: #{mcculloch_pitts_forward.1}
  #allocation0 [shape = 'u32[]', space=smem, size = 0x4, offset = 0x4, fixed_abs, tag = 'smem constant byte address 0x4 - core index']
  #allocation1 [shape = 'u32[144,128]{1,0:T(1,128)}', space=vmem, size = 0x12000, scoped, tag = 'internal scratch']
  %s0 = inlined_call_operand.vmem [shape: f32[64,256], index: 0, kind: input, shape index: {}]
  %s1 = inlined_call_operand.vmem [shape: f32[64,256], index: 1, kind: input, shape index: {}, may-alias: {1,3}]
  %s2 = inlined_call_operand.hbm [shape: u8[64,256], index: 2, kind: output, shape index: {0}]
  %s3 = inlined_call_operand.vmem [shape: f32[64,256], index: 3, kind: output, shape index: {1}, may-alias: {1,3}]
  %4 = xla_tuple %s2, %s3
  %s5 = sld [smem:[#allocation0]]
  $region49: #{mcculloch_pitts_forward.1} parent=0
    _
  %s7 = ssub.s32 1, %s5
  %s8 = scalar_select 0, %s7, %s5
  $region1: #{mcculloch_pitts_forward.1} parent=0
    #allocation2 [shape = 'u8[16384]{0}', space=vmem, size = 0x4000, scoped, tag = 'output window, operand 0']
    #allocation3 [shape = 's32[2]{0}', space=sflag, size = 0x8, scoped, tag = 'scoped memory for mcculloch_pitts_forward.1']
    %9 = vsyncpa [#allocation3], 0
    %s10 = scalar_lea.sflag [#allocation3], 1
    %11 = vsyncpa %s10, 0
    loop: start=0, step=1, limit=4
    $region2: #{mcculloch_pitts_forward.1} parent=1 // loop_pre_header
      _
    $region3: #{mcculloch_pitts_forward.1} parent=1 // loop_header
      %s13 = sphi 0, %s17
      %p14 = scmp.ge.s32.totalorder %s13, 4
      %s23 = sphi 0, %s25
      %s26 = sphi 0, %s23
      %s27 = sphi 0, %s26
      %s43 = sphi 0, %s27
      %s49 = sphi 0, %s51
      %s52 = sphi 0, %s49
      %s53 = sphi 0, %s52
      %s69 = sphi 0, %s53
      %s75 = sphi 0, %s77
      %s78 = sphi 0, %s75
      %s79 = sphi 0, %s78
      %s95 = sphi 0, %s79
      %s101 = sphi 0, %s103
      %s104 = sphi 0, %s101
      %s105 = sphi 0, %s104
      %s121 = sphi 0, %s105
    $region4: #{mcculloch_pitts_forward.1} parent=1 // loop_header_branch
      %16 = sbr.rel (%p14) target = $region8
    $region5: #{mcculloch_pitts_forward.1} parent=1 // loop_body
      %s18 = ssub.s32 %s13, 1
      %s19 = ssub.s32 %s13, 2
      %s20 = sadd.s32 %s13, 1
      %s21 = ssub.s32 %s13, %s20
      %p22 = scmp.eq.s32.totalorder %s21, 0
      %s24 = sadd.s32 %s23, 1
      %s25 = scalar_select %p22, %s23, %s24
      %p28 = pneg %p22
      %p29 = scmp.eq.s32.totalorder %s13, 1
      %p30 = por %p28, %p29
      %p31 = scmp.ne.s32.totalorder %s23, %s26
      %p32 = scmp.eq.s32.totalorder %s13, 0
      %p33 = por %p31, %p32
      %p34 = scmp.ne.s32.totalorder %s23, %s26
      %p35 = scmp.eq.s32.totalorder %s18, 1
      %p36 = por %p34, %p35
      %p37 = scmp.ne.s32.totalorder %s26, %s27
      %p38 = scmp.eq.s32.totalorder %s18, 0
      %p39 = por %p37, %p38
      %p40 = scmp.ne.s32.totalorder %s26, %s27
      %p41 = scmp.eq.s32.totalorder %s19, 1
      %p42 = por %p40, %p41
      %p44 = scmp.ne.s32.totalorder %s27, %s43
      %p45 = scmp.eq.s32.totalorder %s19, 0
      %p46 = por %p44, %p45
      %s47 = ssub.s32 %s13, %s20
      %p48 = scmp.eq.s32.totalorder %s47, 0
      %s50 = sadd.s32 %s49, 1
      %s51 = scalar_select %p48, %s49, %s50
      %p54 = pneg %p48
      %p55 = scmp.eq.s32.totalorder %s13, 1
      %p56 = por %p54, %p55
      %p57 = scmp.ne.s32.totalorder %s49, %s52
      %p58 = scmp.eq.s32.totalorder %s13, 0
      %p59 = por %p57, %p58
      %p60 = scmp.ne.s32.totalorder %s49, %s52
      %p61 = scmp.eq.s32.totalorder %s18, 1
      %p62 = por %p60, %p61
      %p63 = scmp.ne.s32.totalorder %s52, %s53
      %p64 = scmp.eq.s32.totalorder %s18, 0
      %p65 = por %p63, %p64
      %p66 = scmp.ne.s32.totalorder %s52, %s53
      %p67 = scmp.eq.s32.totalorder %s19, 1
      %p68 = por %p66, %p67
      %p70 = scmp.ne.s32.totalorder %s53, %s69
      %p71 = scmp.eq.s32.totalorder %s19, 0
      %p72 = por %p70, %p71
      %s73 = ssub.s32 %s13, %s20
      %p74 = scmp.eq.s32.totalorder %s73, 0
      %s76 = sadd.s32 %s75, 1
      %s77 = scalar_select %p74, %s75, %s76
      %p80 = pneg %p74
      %p81 = scmp.eq.s32.totalorder %s13, 1
      %p82 = por %p80, %p81
      %p83 = scmp.ne.s32.totalorder %s75, %s78
      %p84 = scmp.eq.s32.totalorder %s13, 0
      %p85 = por %p83, %p84
      %p86 = scmp.ne.s32.totalorder %s75, %s78
      %p87 = scmp.eq.s32.totalorder %s18, 1
      %p88 = por %p86, %p87
      %p89 = scmp.ne.s32.totalorder %s78, %s79
      %p90 = scmp.eq.s32.totalorder %s18, 0
      %p91 = por %p89, %p90
      %p92 = scmp.ne.s32.totalorder %s78, %s79
      %p93 = scmp.eq.s32.totalorder %s19, 1
      %p94 = por %p92, %p93
      %p96 = scmp.ne.s32.totalorder %s79, %s95
      %p97 = scmp.eq.s32.totalorder %s19, 0
      %p98 = por %p96, %p97
      %s99 = ssub.s32 %s13, %s20
      %p100 = scmp.eq.s32.totalorder %s99, 0
      %s102 = sadd.s32 %s101, 1
      %s103 = scalar_select %p100, %s101, %s102
      %p106 = pneg %p100
      %p107 = scmp.eq.s32.totalorder %s13, 1
      %p108 = por %p106, %p107
      %p109 = scmp.ne.s32.totalorder %s101, %s104
      %p110 = scmp.eq.s32.totalorder %s13, 0
      %p111 = por %p109, %p110
      %p112 = scmp.ne.s32.totalorder %s101, %s104
      %p113 = scmp.eq.s32.totalorder %s18, 1
      %p114 = por %p112, %p113
      %p115 = scmp.ne.s32.totalorder %s104, %s105
      %p116 = scmp.eq.s32.totalorder %s18, 0
      %p117 = por %p115, %p116
      %p118 = scmp.ne.s32.totalorder %s104, %s105
      %p119 = scmp.eq.s32.totalorder %s19, 1
      %p120 = por %p118, %p119
      %p122 = scmp.ne.s32.totalorder %s105, %s121
      %p123 = scmp.eq.s32.totalorder %s19, 0
      %p124 = por %p122, %p123
      %p125 = scmp.le.s32.totalorder 1, %s13
      %p126 = scmp.lt.s32.totalorder %s13, 3
      %p127 = pnand %p125, %p126
      %p128 = pneg %p127
      // Predicated region
      $region9: #{mcculloch_pitts_forward.1} parent=5 // pred_check
        _
      $region10: #{mcculloch_pitts_forward.1} parent=5 // pred_check_branch
        %130 = sbr.rel (%p127) target = $region12
      $region11: #{mcculloch_pitts_forward.1} parent=5 // pred_region
        %s131 = ssub.s32 %s13, 1
      $region12: #{mcculloch_pitts_forward.1} parent=5 // pred_fallthru
        _
      %p132 = scmp.lt.s32.totalorder %s13, 2
      // Predicated region
      $region13: #{mcculloch_pitts_forward.1} parent=5 // pred_check
        %p133 = pneg %p132
      $region14: #{mcculloch_pitts_forward.1} parent=5 // pred_check_branch
        %135 = sbr.rel (%p133) target = $region16
      $region15: #{mcculloch_pitts_forward.1} parent=5 // pred_region
        // Predicated region
        $region17: #{mcculloch_pitts_forward.1} parent=15 // pred_check
          %p136 = pneg %p33
        $region18: #{mcculloch_pitts_forward.1} parent=15 // pred_check_branch
          %138 = sbr.rel (%p136) target = $region20
        $region19: #{mcculloch_pitts_forward.1} parent=15 // pred_region
          %s139 = smul.u32 4, %s13
          %p140 = scmp.lt.s32.totalorder %s139, 7
          %s141 = scalar_select %p140, %s139, 7
          %s142 = smul.addr %s141, 2
          %s143 = smul.addr %s142, 8
          %s144 = scalar_lea.vmem %s0, %s143
          %s145 = smul.u32 4, %s13
        $region20: #{mcculloch_pitts_forward.1} parent=15 // pred_fallthru
          _
        // Predicated region
        $region21: #{mcculloch_pitts_forward.1} parent=15 // pred_check
          %p146 = pneg %p59
        $region22: #{mcculloch_pitts_forward.1} parent=15 // pred_check_branch
          %148 = sbr.rel (%p146) target = $region24
        $region23: #{mcculloch_pitts_forward.1} parent=15 // pred_region
          %s149 = smul.u32 4, %s13
          %p150 = scmp.lt.s32.totalorder %s149, 7
          %s151 = scalar_select %p150, %s149, 7
          %s152 = smul.addr %s151, 2
          %s153 = smul.addr %s152, 8
          %s154 = scalar_lea.vmem %s1, %s153
          %s155 = smul.u32 4, %s13
        $region24: #{mcculloch_pitts_forward.1} parent=15 // pred_fallthru
          _
      $region16: #{mcculloch_pitts_forward.1} parent=5 // pred_fallthru
        _
      %p156 = scmp.le.s32.totalorder 1, %s13
      %p157 = scmp.lt.s32.totalorder %s13, 3
      %p158 = pnand %p156, %p157
      %p159 = pneg %p158
      // Predicated region
      $region25: #{mcculloch_pitts_forward.1} parent=5 // pred_check
        _
      $region26: #{mcculloch_pitts_forward.1} parent=5 // pred_check_branch
        %161 = sbr.rel (%p158) target = $region28
      $region27: #{mcculloch_pitts_forward.1} parent=5 // pred_region
        %s162 = ssub.s32 %s13, 1
        %s163 = smul.u32 4, %s18
        %p164 = scmp.lt.s32.totalorder %s163, 7
        %s165 = scalar_select %p164, %s163, 7
        %s166 = smul.addr %s165, 2
        %s167 = smul.addr %s166, 8
        %s168 = scalar_lea.vmem %s0, %s167
        %p169 = pneg %p39
        %p170 = pneg %p36
        %s171 = smul.u32 4, %s18
        %p172 = scmp.lt.s32.totalorder %s171, 7
        %s173 = scalar_select %p172, %s171, 7
        %s174 = smul.addr %s173, 2
        %s175 = smul.addr %s174, 8
        %s176 = scalar_lea.vmem %s1, %s175
        %p177 = pneg %p65
        %p178 = pneg %p62
        %p179 = pneg %p91
        %p180 = pneg %p88
        %s181 = sand.u32 %s78, 1
        %s182 = scalar_lea.sflag [#allocation3], %s181
        %s183 = sand.u32 %s78, 1
        %s184 = smul.addr %s183, 16
        %s185 = scalar_lea.vmem [#allocation2], %s184
        %p186 = pneg %p117
        %p187 = pneg %p114
        %s188 = smul.u32 4, %s18
        %p189 = scmp.lt.s32.totalorder %s188, 7
        %s190 = scalar_select %p189, %s188, 7
        %s191 = smul.addr %s190, 2
        %s192 = smul.addr %s191, 8
        %s193 = scalar_lea.vmem %s3, %s192
        %s194 = smul.u32 4, %s18
        %p195 = scmp.lt.s32.totalorder %s194, 7
        %s196 = scalar_select %p195, %s194, 7
        %s197 = smul.addr %s196, 2
        %s198 = smul.addr %s197, 8
        %s199 = scalar_lea.vmem %s0, %s198
        %s200 = smul.u32 4, %s18
        %s201 = smul.u32 4, %s18
        %p202 = scmp.lt.s32.totalorder %s201, 7
        %s203 = scalar_select %p202, %s201, 7
        %s204 = smul.addr %s203, 2
        %s205 = smul.addr %s204, 8
        %s206 = scalar_lea.vmem %s1, %s205
        %s207 = smul.u32 4, %s18
        %s208 = smul.u32 4, %s18
        %p209 = scmp.lt.s32.totalorder %s208, 7
        %s210 = scalar_select %p209, %s208, 7
        %s211 = smul.addr %s210, 2
        %s212 = smul.addr %s211, 8
        %s213 = scalar_lea.vmem %s3, %s212
        %s214 = smul.u32 4, %s18
        %v217 = vld [vmem:[%s199] sm:$0xff]
        %v218 = vld [vmem:[%s199 + $0x8] sm:$0xff]
        %v219 = vld [vmem:[%s199 + $0x10] sm:$0xff]
        %v220 = vld [vmem:[%s199 + $0x18] sm:$0xff]
        %v221 = vld [vmem:[%s199 + $0x20] sm:$0xff]
        %v222 = vld [vmem:[%s199 + $0x28] sm:$0xff]
        %v223 = vld [vmem:[%s199 + $0x30] sm:$0xff]
        %v224 = vld [vmem:[%s199 + $0x38] sm:$0xff]
        %vm225 = vcmp.ge.f32.partialorder %v217, 1.0
        %vm226 = vcmp.ge.f32.partialorder %v218, 1.0
        %vm227 = vcmp.ge.f32.partialorder %v219, 1.0
        %vm228 = vcmp.ge.f32.partialorder %v220, 1.0
        %vm229 = vcmp.ge.f32.partialorder %v221, 1.0
        %vm230 = vcmp.ge.f32.partialorder %v222, 1.0
        %vm231 = vcmp.ge.f32.partialorder %v223, 1.0
        %vm232 = vcmp.ge.f32.partialorder %v224, 1.0
        %vm233 = vmpackc.low %vm227, %vm225
        %vm234 = vmpackc.low %vm231, %vm229
        %vm235 = vmpackc.even %vm234, %vm233
        %vm236 = vmpackc.low %vm228, %vm226
        %vm237 = vmpackc.low %vm232, %vm230
        %vm238 = vmpackc.even %vm237, %vm236
        %v239 = vsel %vm235, 16843009, 0
        %v240 = vsel %vm238, 16843009, 0
        %241 = vst [vmem:[%s185] sm:$0xff] %v239
        %242 = vst [vmem:[%s185 + $0x8] sm:$0xff] %v240
        %v243 = vld [vmem:[%s206] sm:$0xff]
        %v244 = vld [vmem:[%s206 + $0x8] sm:$0xff]
        %v245 = vld [vmem:[%s206 + $0x10] sm:$0xff]
        %v246 = vld [vmem:[%s206 + $0x18] sm:$0xff]
        %v247 = vld [vmem:[%s206 + $0x20] sm:$0xff]
        %v248 = vld [vmem:[%s206 + $0x28] sm:$0xff]
        %v249 = vld [vmem:[%s206 + $0x30] sm:$0xff]
        %v250 = vld [vmem:[%s206 + $0x38] sm:$0xff]
        %v251 = vmul.f32 %v243, 0.99004984
        %v252 = vmul.f32 %v244, 0.99004984
        %v253 = vmul.f32 %v245, 0.99004984
        %v254 = vmul.f32 %v246, 0.99004984
        %v255 = vmul.f32 %v247, 0.99004984
        %v256 = vmul.f32 %v248, 0.99004984
        %v257 = vmul.f32 %v249, 0.99004984
        %v258 = vmul.f32 %v250, 0.99004984
        %v259 = vsel %vm225, 1.0, %v251
        %v260 = vsel %vm226, 1.0, %v252
        %v261 = vsel %vm227, 1.0, %v253
        %v262 = vsel %vm228, 1.0, %v254
        %v263 = vsel %vm229, 1.0, %v255
        %v264 = vsel %vm230, 1.0, %v256
        %v265 = vsel %vm231, 1.0, %v257
        %v266 = vsel %vm232, 1.0, %v258
        %267 = vst [vmem:[%s213] sm:$0xff] %v259
        %268 = vst [vmem:[%s213 + $0x8] sm:$0xff] %v260
        %269 = vst [vmem:[%s213 + $0x10] sm:$0xff] %v261
        %270 = vst [vmem:[%s213 + $0x18] sm:$0xff] %v262
        %271 = vst [vmem:[%s213 + $0x20] sm:$0xff] %v263
        %272 = vst [vmem:[%s213 + $0x28] sm:$0xff] %v264
        %273 = vst [vmem:[%s213 + $0x30] sm:$0xff] %v265
        %274 = vst [vmem:[%s213 + $0x38] sm:$0xff] %v266
        %s275 = sand.u32 %s78, 1
        %s276 = scalar_lea.sflag [#allocation3], %s275
        %s277 = sand.u32 %s78, 1
        %s278 = smul.addr %s277, 16
        %s279 = scalar_lea.vmem [#allocation2], %s278
        %s280 = smul.u32 4, %s18
        %p281 = scmp.lt.s32.totalorder %s280, 7
        %s282 = scalar_select %p281, %s280, 7
        %s283 = smul.addr %s282, 2
        %s284 = smul.addr %s283, 8
        %s285 = scalar_lea.vmem %s3, %s284
        // Predicated region
        $region29: #{mcculloch_pitts_forward.1} parent=27 // pred_check
          %p286 = pneg %p88
        $region30: #{mcculloch_pitts_forward.1} parent=27 // pred_check_branch
          %288 = sbr.rel (%p286) target = $region32
        $region31: #{mcculloch_pitts_forward.1} parent=27 // pred_region
          %s290 = ssub.s32 256, 256
          %291 = vsyncadd %s276, %s290
          %s292 = smul.addr %s18, 2
          %s293 = smul.addr %s292, 128
          %s294 = scalar_lea.hbm %s2, %s293
          %s296 = sshll.u32 %s279, 4
          %s297 = int_to_ptr.vmem [resolvable:$true] %s296
          %299 = dma.vmem_to_hbm [thread:$0]  %s297, 256, %s294, %s276
        $region32: #{mcculloch_pitts_forward.1} parent=27 // pred_fallthru
          _
        // Predicated region
        $region33: #{mcculloch_pitts_forward.1} parent=27 // pred_check
          %p300 = pneg %p114
        $region34: #{mcculloch_pitts_forward.1} parent=27 // pred_check_branch
          %302 = sbr.rel (%p300) target = $region36
        $region35: #{mcculloch_pitts_forward.1} parent=27 // pred_region
          %s303 = smul.u32 4, %s18
        $region36: #{mcculloch_pitts_forward.1} parent=27 // pred_fallthru
          _
      $region28: #{mcculloch_pitts_forward.1} parent=5 // pred_fallthru
        _
      %p304 = scmp.le.s32.totalorder 2, %s13
      // Predicated region
      $region37: #{mcculloch_pitts_forward.1} parent=5 // pred_check
        %p305 = pneg %p304
      $region38: #{mcculloch_pitts_forward.1} parent=5 // pred_check_branch
        %307 = sbr.rel (%p305) target = $region40
      $region39: #{mcculloch_pitts_forward.1} parent=5 // pred_region
        %s308 = ssub.s32 %s13, 2
        // Predicated region
        $region41: #{mcculloch_pitts_forward.1} parent=39 // pred_check
          %p309 = pneg %p94
        $region42: #{mcculloch_pitts_forward.1} parent=39 // pred_check_branch
          %311 = sbr.rel (%p309) target = $region44
        $region43: #{mcculloch_pitts_forward.1} parent=39 // pred_region
          %s312 = sand.u32 %s79, 1
          %s313 = scalar_lea.sflag [#allocation3], %s312
          %s314 = sand.u32 %s79, 1
          %s315 = smul.addr %s314, 16
          %s316 = scalar_lea.vmem [#allocation2], %s315
          %317 = dma.done %s313, 256
        $region44: #{mcculloch_pitts_forward.1} parent=39 // pred_fallthru
          _
        // Predicated region
        $region45: #{mcculloch_pitts_forward.1} parent=39 // pred_check
          %p318 = pneg %p120
        $region46: #{mcculloch_pitts_forward.1} parent=39 // pred_check_branch
          %320 = sbr.rel (%p318) target = $region48
        $region47: #{mcculloch_pitts_forward.1} parent=39 // pred_region
          %s321 = smul.u32 4, %s19
          %p322 = scmp.lt.s32.totalorder %s321, 7
          %s323 = scalar_select %p322, %s321, 7
          %s324 = smul.addr %s323, 2
          %s325 = smul.addr %s324, 8
          %s326 = scalar_lea.vmem %s3, %s325
        $region48: #{mcculloch_pitts_forward.1} parent=39 // pred_fallthru
          _
      $region40: #{mcculloch_pitts_forward.1} parent=5 // pred_fallthru
        _
    $region6: #{mcculloch_pitts_forward.1} parent=1 // loop_footer
      %s17 = sadd.s32 1, %s13
    $region7: #{mcculloch_pitts_forward.1} parent=1 // loop_footer_branch
      %12 = sbr.rel target = $region3
    $region8: #{mcculloch_pitts_forward.1} parent=1 // loop_exit
      _
    %327 = vsyncpa [#allocation3], 1
    %s328 = scalar_lea.sflag [#allocation3], 1
    %329 = vsyncpa %s328, 1

</llo_original>
